<compile_context>
chip_gen: v7x
topology: tpu7x:2x2x1
jax: 0.10.0
libtpu: 0.0.40
codegen_flags: <defaults>
</compile_context>

<pallas_src>
import jax
import jax.numpy as jnp
from jax.experimental import pallas as pl
from jax.experimental.pallas import tpu as pltpu


def _round_up(x, m):
    return ((x + m - 1) // m) * m


def _elmo_kernel(x_ref, wsel_ref, o_ref):
    # x_ref:    [tn, C*Lm]  row tile, layer axis interleaved in lanes (HBM order)
    # wsel_ref: [C*Lm, C]   per-chunk block-diagonal softmax(weights)*scalar matrix
    # o_ref:    [tn, C]
    o_ref[...] = jnp.dot(
        x_ref[...],
        wsel_ref[...],
        preferred_element_type=jnp.float32,
    ).astype(o_ref.dtype)


def elmo_embeddings_forward(lm_emb, weights, scalar, *, tile_n=512):
    """Pallas equivalent of ElmoEmbeddings.forward.

    lm_emb : [S, L, E, Lm]  (any float dtype; output preserves it)
    weights: [Lm]           raw layer weights (softmax applied here)
    scalar : [1]
    returns (out [S, L, E], weights, scalar) — mirrors the PyTorch module.
    """
    S, L, E, Lm = lm_emb.shape
    N = S * L
    dtype = lm_emb.dtype
    f32 = jnp.float32

    # Hoisted grid-invariant scalar math: softmax over layers, scaled.
    w = jax.nn.softmax(weights.astype(f32), axis=0) * scalar.astype(f32)[0]   # [Lm]

    # Output-column chunk aligned to the MXU (256 on v6e/v7x, 128 on v5e);
    # fall back to the full E when it does not chunk evenly (e.g. tiny E).
    C = E
    for cand in (256, 128):
        if E % cand == 0:
            C = cand
            break

    # Per-chunk selection matrix (identical for every diagonal chunk):
    #   wsel[c*Lm + k, c'] = (c == c') * softmax(weights)[k] * scalar
    wsel = jnp.kron(jnp.eye(C, dtype=f32), w.reshape(Lm, 1)).astype(dtype)    # [C*Lm, C]

    # Free row-major reshape: x[n, e*Lm + k] == lm_emb[s, l, e, k], n = s*L + l.
    x = lm_emb.reshape(N, E * Lm)

    # Row tile: multiple of 8 sublanes; keep >= 2 row blocks when possible so
    # the "parallel" axis can be sharded across both v7x TensorCores.
    tn = max(8, (min(tile_n, _round_up(N, 8)) // 8) * 8)
    if pl.cdiv(N, tn) < 2 and N > 8:
        tn = max(8, _round_up(pl.cdiv(N, 2), 8))

    grid = (pl.cdiv(N, tn), E // C)

    dsize = jnp.dtype(dtype).itemsize
    cost = pl.CostEstimate(
        flops=2 * N * E * Lm,                       # true weighted-sum work
        transcendentals=0,
        bytes_accessed=N * E * Lm * dsize + N * E * dsize + wsel.size * dsize,
    )

    out = pl.pallas_call(
        _elmo_kernel,
        grid=grid,
        in_specs=[
            pl.BlockSpec((tn, C * Lm), lambda i, j: (i, j)),   # streamed row/col tiles
            pl.BlockSpec((C * Lm, C), lambda i, j: (0, 0)),    # tiny resident chunk
        ],
        out_specs=pl.BlockSpec((tn, C), lambda i, j: (i, j)),
        out_shape=jax.ShapeDtypeStruct((N, E), dtype),
        compiler_params=pltpu.CompilerParams(
            dimension_semantics=("parallel", "parallel"),
        ),
        cost_estimate=cost,
    )(x, wsel)

    return out.reshape(S, L, E), weights, scalar


if __name__ == "__main__":
    # Small deterministic example: 2 sentences, length 8, emb size 32, 3 LM layers.
    S, L, E, Lm = 2, 8, 32, 3
    key = jax.random.PRNGKey(0)
    k1, k2 = jax.random.split(key, 2)

    lm_emb = jax.random.normal(k1, (S, L, E, Lm), jnp.float32)
    weights = jax.random.normal(k2, (Lm,), jnp.float32) * 0.1   # raw layer weights
    scalar = jnp.full((1,), 1.5, jnp.float32)

    out, w_out, s_out = elmo_embeddings_forward(lm_emb, weights, scalar)
    jax.block_until_ready((out, w_out, s_out))

    # Pure-JAX reference mirroring the PyTorch forward.
    sm = jax.nn.softmax(weights, axis=0)
    ref = (lm_emb.reshape(S * L * E, Lm) @ sm[:, None]).reshape(S, L, E) * scalar

    assert out.shape == (S, L, E)
    assert out.dtype == lm_emb.dtype
    assert w_out.shape == (Lm,)
    assert s_out.shape == (1,)
    # Default MXU precision (bf16 passes) instead of HIGHEST -> looser tolerance.
    assert jnp.allclose(out, ref, rtol=2e-2, atol=2e-2), float(jnp.max(jnp.abs(out - ref)))
    print("KERNEL_OK")
</pallas_src>

<mosaic_0001>
module attributes {stable_mosaic.version = 11 : i64} {
  func.func @_elmo_kernel(%arg0: i32, %arg1: i32, %arg2: memref<8x96xf32, #tpu.memory_space<vmem>>, %arg3: memref<96x32xf32, #tpu.memory_space<vmem>>, %arg4: memref<8x32xf32, #tpu.memory_space<vmem>>) attributes {dimension_semantics = [#tpu.dimension_semantics<parallel>, #tpu.dimension_semantics<parallel>], iteration_bounds = array<i64: 2, 1>, scalar_prefetch = 0 : i64, scratch_operands = 0 : i64, tpu.core_type = #tpu.core_type<tc>, window_params = [{transform_indices = @transform_0, window_bounds = array<i64: 8, 96>}, {pipeline_mode = #tpu.pipeline_mode<synchronous>, transform_indices = @transform_1, window_bounds = array<i64: 96, 32>}, {transform_indices = @transform_2, window_bounds = array<i64: 8, 32>}]} {
    %c0 = arith.constant 0 : index
    %c0_0 = arith.constant 0 : index
    %0 = vector.load %arg2[%c0, %c0_0] : memref<8x96xf32, #tpu.memory_space<vmem>>, vector<8x96xf32>
    %c0_1 = arith.constant 0 : index
    %c0_2 = arith.constant 0 : index
    %1 = vector.load %arg3[%c0_1, %c0_2] : memref<96x32xf32, #tpu.memory_space<vmem>>, vector<96x32xf32>
    %cst = arith.constant dense<0.000000e+00> : vector<8x32xf32>
    %2 = tpu.matmul %0, %1, %cst {dimension_numbers = #tpu.dot_dimension_numbers<[1], [0], [0], [1], [0, 0, 1, 1], [], []>} : vector<8x96xf32>, vector<96x32xf32>, vector<8x32xf32> -> vector<8x32xf32>
    %c0_3 = arith.constant 0 : index
    %c0_4 = arith.constant 0 : index
    %3 = vector.load %arg4[%c0_3, %c0_4] : memref<8x32xf32, #tpu.memory_space<vmem>>, vector<8x32xf32>
    tpu.vector_store %arg4[%c0_3, %c0_4], %2 {strides = array<i32>} : memref<8x32xf32, #tpu.memory_space<vmem>>, vector<8x32xf32>,
    return
  }
  func.func @transform_0(%arg0: i32, %arg1: i32) -> (i32, i32) {
    %c0_i32 = arith.constant 0 : i32
    return %arg0, %arg1 : i32, i32
  }
  func.func @transform_1(%arg0: i32, %arg1: i32) -> (i32, i32) {
    %c0_i32 = arith.constant 0 : i32
    %c0_i32_0 = arith.constant 0 : i32
    %c0_i32_1 = arith.constant 0 : i32
    return %c0_i32, %c0_i32_0 : i32, i32
  }
  func.func @transform_2(%arg0: i32, %arg1: i32) -> (i32, i32) {
    %c0_i32 = arith.constant 0 : i32
    return %arg0, %arg1 : i32, i32
  }
}

</mosaic_0001>

<llo_original>
// kernel: tpu_custom_call.1
$region0: #{tpu_custom_call.1}
  #allocation0 [shape = 'u32[]', space=smem, size = 0x4, offset = 0x4, fixed_abs, tag = 'smem constant byte address 0x4 - core index']
  #allocation1 [shape = 'u32[144,128]{1,0:T(1,128)}', space=vmem, size = 0x12000, scoped, tag = 'internal scratch']
  %s0 = inlined_call_operand.vmem [shape: f32[16,96], index: 0, kind: input, shape index: {}]
  %s1 = inlined_call_operand.vmem [shape: f32[96,32], index: 1, kind: input, shape index: {}]
  %s2 = inlined_call_operand.hbm [shape: f32[16,32], index: 2, kind: output, shape index: {}]
  %s3 = sld [smem:[#allocation0]]
  $region41: #{tpu_custom_call.1} parent=0
    _
  %s5 = ssub.s32 1, %s3
  %s6 = scalar_select 0, %s5, %s3
  $region1: #{tpu_custom_call.1} parent=0
    #allocation2 [shape = 'u8[8192]{0}', space=vmem, size = 0x2000, scoped, tag = 'output window, operand 0']
    #allocation3 [shape = 's32[2]{0}', space=sflag, size = 0x8, scoped, tag = 'scoped memory for tpu_custom_call.1']
    %7 = vsyncpa [#allocation3], 0
    %s8 = scalar_lea.sflag [#allocation3], 1
    %9 = vsyncpa %s8, 0
    loop: start=0, step=1, limit=4
    $region2: #{tpu_custom_call.1} parent=1 // loop_pre_header
      _
    $region3: #{tpu_custom_call.1} parent=1 // loop_header
      %s11 = sphi 0, %s15
      %p12 = scmp.ge.s32.totalorder %s11, 4
      %s18 = sphi 0, %s30
      %s19 = sphi 0, %s26
      %s20 = sphi 0, %s18
      %s21 = sphi 0, %s19
      %s22 = sphi 0, %s20
      %s23 = sphi 0, %s21
      %s35 = sphi 0, %s37
      %s38 = sphi 0, %s35
      %s39 = sphi 0, %s38
      %s55 = sphi 0, %s39
      %s59 = sphi 0, %s59
      %s61 = sphi 0, %s59
      %s62 = sphi 0, %s61
      %s76 = sphi 0, %s62
      %s84 = sphi 0, %s86
      %s87 = sphi 0, %s84
      %s88 = sphi 0, %s87
      %s104 = sphi 0, %s88
    $region4: #{tpu_custom_call.1} parent=1 // loop_header_branch
      %14 = sbr.rel (%p12) target = $region8
    $region5: #{tpu_custom_call.1} parent=1 // loop_body
      %s16 = ssub.s32 %s11, 1
      %s17 = ssub.s32 %s11, 2
      %s24 = sadd.s32 1, %s19
      %p25 = scmp.ge.s32.totalorder %s24, 1
      %s26 = scalar_select %p25, 0, %s24
      %s27 = sadd.s32 1, %s18
      %s28 = scalar_select %p25, %s27, %s18
      %p29 = scmp.ge.s32.totalorder %s28, 2
      %s30 = scalar_select %p29, 0, %s28
      %s31 = ssub.s32 %s18, %s30
      %s32 = ssub.s32 %s19, %s26
      %s33 = sor.u32 %s31, %s32
      %p34 = scmp.eq.s32.totalorder %s33, 0
      %s36 = sadd.s32 %s35, 1
      %s37 = scalar_select %p34, %s35, %s36
      %p40 = pneg %p34
      %p41 = scmp.eq.s32.totalorder %s11, 1
      %p42 = por %p40, %p41
      %p43 = scmp.ne.s32.totalorder %s35, %s38
      %p44 = scmp.eq.s32.totalorder %s11, 0
      %p45 = por %p43, %p44
      %p46 = scmp.ne.s32.totalorder %s35, %s38
      %p47 = scmp.eq.s32.totalorder %s16, 1
      %p48 = por %p46, %p47
      %p49 = scmp.ne.s32.totalorder %s38, %s39
      %p50 = scmp.eq.s32.totalorder %s16, 0
      %p51 = por %p49, %p50
      %p52 = scmp.ne.s32.totalorder %s38, %s39
      %p53 = scmp.eq.s32.totalorder %s17, 1
      %p54 = por %p52, %p53
      %p56 = scmp.ne.s32.totalorder %s39, %s55
      %p57 = scmp.eq.s32.totalorder %s17, 0
      %p58 = por %p56, %p57
      %s60 = sadd.s32 %s59, 1
      %p63 = scmp.eq.s32.totalorder %s11, 1
      %p64 = scmp.ne.s32.totalorder %s59, %s61
      %p65 = scmp.eq.s32.totalorder %s11, 0
      %p66 = por %p64, %p65
      %p67 = scmp.ne.s32.totalorder %s59, %s61
      %p68 = scmp.eq.s32.totalorder %s16, 1
      %p69 = por %p67, %p68
      %p70 = scmp.ne.s32.totalorder %s61, %s62
      %p71 = scmp.eq.s32.totalorder %s16, 0
      %p72 = por %p70, %p71
      %p73 = scmp.ne.s32.totalorder %s61, %s62
      %p74 = scmp.eq.s32.totalorder %s17, 1
      %p75 = por %p73, %p74
      %p77 = scmp.ne.s32.totalorder %s62, %s76
      %p78 = scmp.eq.s32.totalorder %s17, 0
      %p79 = por %p77, %p78
      %s80 = ssub.s32 %s18, %s30
      %s81 = ssub.s32 %s19, %s26
      %s82 = sor.u32 %s80, %s81
      %p83 = scmp.eq.s32.totalorder %s82, 0
      %s85 = sadd.s32 %s84, 1
      %s86 = scalar_select %p83, %s84, %s85
      %p89 = pneg %p83
      %p90 = scmp.eq.s32.totalorder %s11, 1
      %p91 = por %p89, %p90
      %p92 = scmp.ne.s32.totalorder %s84, %s87
      %p93 = scmp.eq.s32.totalorder %s11, 0
      %p94 = por %p92, %p93
      %p95 = scmp.ne.s32.totalorder %s84, %s87
      %p96 = scmp.eq.s32.totalorder %s16, 1
      %p97 = por %p95, %p96
      %p98 = scmp.ne.s32.totalorder %s87, %s88
      %p99 = scmp.eq.s32.totalorder %s16, 0
      %p100 = por %p98, %p99
      %p101 = scmp.ne.s32.totalorder %s87, %s88
      %p102 = scmp.eq.s32.totalorder %s17, 1
      %p103 = por %p101, %p102
      %p105 = scmp.ne.s32.totalorder %s88, %s104
      %p106 = scmp.eq.s32.totalorder %s17, 0
      %p107 = por %p105, %p106
      %p108 = scmp.le.s32.totalorder 1, %s11
      %p109 = scmp.lt.s32.totalorder %s11, 3
      %p110 = pnand %p108, %p109
      %p111 = pneg %p110
      // Predicated region
      $region9: #{tpu_custom_call.1} parent=5 // pred_check
        _
      $region10: #{tpu_custom_call.1} parent=5 // pred_check_branch
        %113 = sbr.rel (%p110) target = $region12
      $region11: #{tpu_custom_call.1} parent=5 // pred_region
        %s114 = ssub.s32 %s11, 1
        // Predicated region
        $region13: #{tpu_custom_call.1} parent=11 // pred_check
          %p115 = pneg %p72
        $region14: #{tpu_custom_call.1} parent=11 // pred_check_branch
          %117 = sbr.rel (%p115) target = $region16
        $region15: #{tpu_custom_call.1} parent=11 // pred_region
          _
        $region16: #{tpu_custom_call.1} parent=11 // pred_fallthru
          _
      $region12: #{tpu_custom_call.1} parent=5 // pred_fallthru
        _
      %p118 = scmp.lt.s32.totalorder %s11, 2
      // Predicated region
      $region17: #{tpu_custom_call.1} parent=5 // pred_check
        %p119 = pneg %p118
      $region18: #{tpu_custom_call.1} parent=5 // pred_check_branch
        %121 = sbr.rel (%p119) target = $region20
      $region19: #{tpu_custom_call.1} parent=5 // pred_region
        // Predicated region
        $region21: #{tpu_custom_call.1} parent=19 // pred_check
          %p122 = pneg %p45
        $region22: #{tpu_custom_call.1} parent=19 // pred_check_branch
          %124 = sbr.rel (%p122) target = $region24
        $region23: #{tpu_custom_call.1} parent=19 // pred_region
          %p125 = scmp.lt.s32.totalorder %s18, 1
          %s126 = scalar_select %p125, %s18, 1
          %p127 = scmp.lt.s32.totalorder %s19, 0
          %s128 = scalar_select %p127, %s19, 0
          %s129 = sadd.s32 %s128, %s126
          %s130 = smul.addr %s129, 8
          %s131 = scalar_lea.vmem %s0, %s130
        $region24: #{tpu_custom_call.1} parent=19 // pred_fallthru
          _
      $region20: #{tpu_custom_call.1} parent=5 // pred_fallthru
        _
      %p132 = scmp.le.s32.totalorder 1, %s11
      %p133 = scmp.lt.s32.totalorder %s11, 3
      %p134 = pnand %p132, %p133
      %p135 = pneg %p134
      // Predicated region
      $region25: #{tpu_custom_call.1} parent=5 // pred_check
        _
      $region26: #{tpu_custom_call.1} parent=5 // pred_check_branch
        %137 = sbr.rel (%p134) target = $region28
      $region27: #{tpu_custom_call.1} parent=5 // pred_region
        %s138 = ssub.s32 %s11, 1
        %p139 = scmp.lt.s32.totalorder %s20, 1
        %s140 = scalar_select %p139, %s20, 1
        %p141 = scmp.lt.s32.totalorder %s21, 0
        %s142 = scalar_select %p141, %s21, 0
        %s143 = sadd.s32 %s142, %s140
        %s144 = smul.addr %s143, 8
        %s145 = scalar_lea.vmem %s0, %s144
        %p146 = pneg %p51
        %p147 = pneg %p48
        %p148 = pneg %p72
        %p149 = pneg %p69
        %p150 = pneg %p100
        %p151 = pneg %p97
        %s152 = sand.u32 %s87, 1
        %s153 = scalar_lea.sflag [#allocation3], %s152
        %s154 = sand.u32 %s87, 1
        %s155 = smul.addr %s154, 8
        %s156 = scalar_lea.vmem [#allocation2], %s155
        %p157 = scmp.lt.s32.totalorder %s20, 1
        %s158 = scalar_select %p157, %s20, 1
        %p159 = scmp.lt.s32.totalorder %s21, 0
        %s160 = scalar_select %p159, %s21, 0
        %s161 = sadd.s32 %s160, %s158
        %s162 = smul.addr %s161, 8
        %s163 = scalar_lea.vmem %s0, %s162
        %v164 = vld [vmem:[%s163] sm:$0xff]
        %v165 = vld [vmem:[%s1] sm:$0xff]
        %v166 = vld [vmem:[%s1 + $0x8] sm:$0xff]
        %v167 = vld [vmem:[%s1 + $0x10] sm:$0xff]
        %v168 = vld [vmem:[%s1 + $0x18] sm:$0xff]
        %v169 = vld [vmem:[%s1 + $0x20] sm:$0xff]
        %v170 = vld [vmem:[%s1 + $0x28] sm:$0xff]
        %v171 = vld [vmem:[%s1 + $0x30] sm:$0xff]
        %v172 = vld [vmem:[%s1 + $0x38] sm:$0xff]
        %v173 = vld [vmem:[%s1 + $0x40] sm:$0xff]
        %v174 = vld [vmem:[%s1 + $0x48] sm:$0xff]
        %v175 = vld [vmem:[%s1 + $0x50] sm:$0xff]
        %v176 = vld [vmem:[%s1 + $0x58] sm:$0xff]
        %vm177 = vcmask 785408
        %v179 = vsel %vm177, %v164, 0
        %181 = vmatprep.subr.mxu0 0.0
        %182 = vmatpush1.msra.mxu0 %v165
        %183 = vmatprep.subr.mxu0 0.0
        %184 = vmatpush1.msra.mxu0 %v166
        %185 = vmatprep.subr.mxu0 0.0
        %186 = vmatpush1.msra.mxu0 %v167
        %187 = vmatprep.subr.mxu0 0.0
        %188 = vmatpush1.msra.mxu0 %v168
        %189 = vmatprep.subr.mxu0 0.0
        %190 = vmatpush1.msra.mxu0 %v169
        %191 = vmatprep.subr.mxu0 0.0
        %192 = vmatpush1.msra.mxu0 %v170
        %193 = vmatprep.subr.mxu0 0.0
        %194 = vmatpush1.msra.mxu0 %v171
        %195 = vmatprep.subr.mxu0 0.0
        %196 = vmatpush1.msra.mxu0 %v172
        %197 = vmatprep.subr.mxu0 0.0
        %198 = vmatpush1.msra.mxu0 %v173
        %199 = vmatprep.subr.mxu0 0.0
        %200 = vmatpush1.msra.mxu0 %v174
        %201 = vmatprep.subr.mxu0 0.0
        %202 = vmatpush1.msra.mxu0 %v175
        %203 = vmatprep.subr.mxu0 0.0
        %204 = vmatpush1.msra.mxu0 %v176
        %205 = vmatprep.subr.mxu0 0.0
        %206 = vmatpush1.msra.mxu0 0.0
        %207 = vmatprep.subr.mxu0 0.0
        %208 = vmatpush1.msra.mxu0 0.0
        %209 = vmatprep.subr.mxu0 0.0
        %210 = vmatpush1.msra.mxu0 0.0
        %211 = vmatprep.subr.mxu0 0.0
        %212 = vmatpush1.msra.mxu0 0.0
        %213 = vmatprep.subr.mxu0 0.0
        %214 = vmatpush1.msra.mxu0 0.0
        %215 = vmatprep.subr.mxu0 0.0
        %216 = vmatpush1.msra.mxu0 0.0
        %217 = vmatprep.subr.mxu0 0.0
        %218 = vmatpush1.msra.mxu0 0.0
        %219 = vmatprep.subr.mxu0 0.0
        %220 = vmatpush1.msra.mxu0 0.0
        %221 = vmatprep.subr.mxu0 0.0
        %222 = vmatpush1.msra.mxu0 0.0
        %223 = vmatprep.subr.mxu0 0.0
        %224 = vmatpush1.msra.mxu0 0.0
        %225 = vmatprep.subr.mxu0 0.0
        %226 = vmatpush1.msra.mxu0 0.0
        %227 = vmatprep.subr.mxu0 0.0
        %228 = vmatpush1.msra.mxu0 0.0
        %229 = vmatprep.subr.mxu0 0.0
        %230 = vmatpush1.msra.mxu0 0.0
        %231 = vmatprep.subr.mxu0 0.0
        %232 = vmatpush1.msra.mxu0 0.0
        %233 = vmatprep.subr.mxu0 0.0
        %234 = vmatpush1.msra.mxu0 0.0
        %235 = vmatprep.subr.mxu0 0.0
        %236 = vmatpush1.msra.mxu0 0.0
        %237 = vmatprep.subr.mxu0 0.0
        %238 = vmatpush1.msra.mxu0 0.0
        %239 = vmatprep.subr.mxu0 0.0
        %240 = vmatpush1.msra.mxu0 0.0
        %241 = vmatprep.subr.mxu0 0.0
        %242 = vmatpush1.msra.mxu0 0.0
        %243 = vmatprep.subr.mxu0 0.0
        %244 = vmatpush1.msra.mxu0 0.0
        %245 = vmatprep.mubr.f32.mxu0 0.0
        %246 = vmatmul.mubr.f32.gmra.mrb[0].mxu0 %v179
        %v247 = vpop.f32.mrb[0].mxu0
        %v248 = vadd.f32 0.0, %v247
        %v249 = vpop.f32.mrb[0].mxu0
        %250 = vdwg.mxu0
        %vm251 = vcmask 261120
        %252 = vst.msk [vmem:[%s156] sm:$0xff] %vm251, %v248
        %s253 = sand.u32 %s87, 1
        %s254 = scalar_lea.sflag [#allocation3], %s253
        %s255 = sand.u32 %s87, 1
        %s256 = smul.addr %s255, 8
        %s257 = scalar_lea.vmem [#allocation2], %s256
        // Predicated region
        $region29: #{tpu_custom_call.1} parent=27 // pred_check
          %p258 = pneg %p97
        $region30: #{tpu_custom_call.1} parent=27 // pred_check_branch
          %260 = sbr.rel (%p258) target = $region32
        $region31: #{tpu_custom_call.1} parent=27 // pred_region
          %s262 = ssub.s32 128, 128
          %263 = vsyncadd %s254, %s262
          %s264 = sadd.s32 %s21, %s20
          %s265 = smul.addr %s264, 128
          %s266 = scalar_lea.hbm %s2, %s265
          %s268 = sshll.u32 %s257, 4
          %s269 = int_to_ptr.vmem [resolvable:$true] %s268
          %271 = dma.vmem_to_hbm [thread:$0]  %s269, 128, %s266, %s254
        $region32: #{tpu_custom_call.1} parent=27 // pred_fallthru
          _
      $region28: #{tpu_custom_call.1} parent=5 // pred_fallthru
        _
      %p272 = scmp.le.s32.totalorder 2, %s11
      // Predicated region
      $region33: #{tpu_custom_call.1} parent=5 // pred_check
        %p273 = pneg %p272
      $region34: #{tpu_custom_call.1} parent=5 // pred_check_branch
        %275 = sbr.rel (%p273) target = $region36
      $region35: #{tpu_custom_call.1} parent=5 // pred_region
        %s276 = ssub.s32 %s11, 2
        // Predicated region
        $region37: #{tpu_custom_call.1} parent=35 // pred_check
          %p277 = pneg %p103
        $region38: #{tpu_custom_call.1} parent=35 // pred_check_branch
          %279 = sbr.rel (%p277) target = $region40
        $region39: #{tpu_custom_call.1} parent=35 // pred_region
          %s280 = sand.u32 %s88, 1
          %s281 = scalar_lea.sflag [#allocation3], %s280
          %s282 = sand.u32 %s88, 1
          %s283 = smul.addr %s282, 8
          %s284 = scalar_lea.vmem [#allocation2], %s283
          %285 = dma.done %s281, 128
        $region40: #{tpu_custom_call.1} parent=35 // pred_fallthru
          _
      $region36: #{tpu_custom_call.1} parent=5 // pred_fallthru
        _
    $region6: #{tpu_custom_call.1} parent=1 // loop_footer
      %s15 = sadd.s32 1, %s11
    $region7: #{tpu_custom_call.1} parent=1 // loop_footer_branch
      %10 = sbr.rel target = $region3
    $region8: #{tpu_custom_call.1} parent=1 // loop_exit
      _
    %286 = vsyncpa [#allocation3], 1
    %s287 = scalar_lea.sflag [#allocation3], 1
    %288 = vsyncpa %s287, 1

</llo_original>
